<compile_context>
chip_gen: v5e
topology: v5e:2x2
jax: 0.10.0
libtpu: 0.0.40
codegen_flags: <defaults>
</compile_context>

<pallas_src>
import math

import jax
import jax.numpy as jnp
from jax.experimental import pallas as pl
from jax.experimental.pallas import tpu as pltpu


def _complex_relu_kernel(real_ref, img_ref, out_real_ref, out_img_ref):
    real = real_ref[...]
    img = img_ref[...]
    # Match PyTorch exactly: mask = 1.0*(real>=0); out = mask*x.  Multiplying
    # by the mask (rather than jnp.where) preserves NaN/Inf propagation.
    gate = real >= 0
    out_real_ref[...] = real * gate.astype(real.dtype)
    out_img_ref[...] = img * gate.astype(img.dtype)


def _sublane_rows(dtype):
    """Native sublane packing: 8 rows (4B), 16 (2B), 32 (1B) per vreg tile."""
    return max(8, 32 // jnp.dtype(dtype).itemsize)


def _tpu_hints():
    """Return (likely_two_tensorcores, vmem_capacity_bytes), safe fallbacks."""
    vmem_cap = 128 * 1024 * 1024          # v5e / v6e physical VMEM per TC
    two_cores = False
    try:
        info = pltpu.get_tpu_info()
        vmem_cap = int(getattr(info, "vmem_capacity_bytes", vmem_cap)) or vmem_cap
        # v7x: 64 MiB VMEM per TensorCore and 2 TCs per chip.
        two_cores = vmem_cap <= 96 * 1024 * 1024
    except Exception:
        pass
    return two_cores, vmem_cap


def complex_relu(real, img=None, *, max_tile_bytes=None):
    """Pallas equivalent of complex_relu_layer.forward.

    Accepts either (real, img) or a single (real, img) pair with img=None,
    mirroring the PyTorch module's calling convention.  Returns
    (real_out, img_out); each output keeps its input's dtype and shape.
    """
    # TODO(synk): when real/img are produced by an adjacent Pallas/XLA op,
    # fuse this gate into that kernel's epilogue (or the consumer's prologue)
    # instead of paying a full HBM read+write round trip for ~3 VPU ops/elem.
    if img is None:
        real, img = real[0], real[1]
    real = jnp.asarray(real)
    img = jnp.asarray(img)
    assert real.shape == img.shape, "real/img must have the same shape"
    orig_shape = real.shape
    total = math.prod(orig_shape)
    if total == 0:
        return real, img

    f0 = orig_shape[-1] if len(orig_shape) >= 1 else 1

    # ---- Choose a lane-dense 2D view --------------------------------------
    if f0 % 128 == 0:
        n2d, f2d = total // f0, f0
    elif total % 128 == 0:
        # Re-block the (contiguous) array into lane-dense rows so stores are
        # full-width `vst`, not masked `vst.msk` (biggest single store-path
        # lever measured). Reshape of a contiguous array is layout plumbing.
        lane = 128
        while lane * 2 <= 2048 and total % (lane * 2) == 0:
            lane *= 2
        n2d, f2d = total // lane, lane
    else:
        # Ragged fallback: masked partial stores, still correct.
        n2d, f2d = total // f0, f0

    real2d = real.reshape(n2d, f2d)
    img2d = img.reshape(n2d, f2d)

    real_bytes = jnp.dtype(real.dtype).itemsize
    img_bytes = jnp.dtype(img.dtype).itemsize
    elem_bytes = max(real_bytes, img_bytes)
    sub = max(_sublane_rows(real.dtype), _sublane_rows(img.dtype))

    two_cores, vmem_cap = _tpu_hints()
    if max_tile_bytes is None:
        # v7x (~3.2 TB/s HBM): bigger blocks keep the ~0.35us per-step
        # overhead under ~10% of a step; v5e/v6e steps are long enough at 2MiB.
        max_tile_bytes = (4 if two_cores else 2) * 1024 * 1024

    # ---- Feature (lane) tiling: full-F slabs unless even a minimal sub-row
    # full-F slab exceeds the budget; split at a multiple of 128 (cdiv grid
    # handles the ragged last block, so F need not be a multiple of 128).
    tile_f = f2d
    if f2d > 128 and sub * f2d * elem_bytes > max_tile_bytes:
        tile_f = (max_tile_bytes // (sub * elem_bytes)) // 128 * 128
        tile_f = int(min(max(tile_f, 512), f2d))

    # ---- Row (sublane) tiling: ~max_tile_bytes per block, rounded to the
    # dtypes' native sublane packing.
    if n2d <= sub:
        tile_n = n2d
    else:
        row_bytes = max(tile_f * elem_bytes, 1)
        budget_rows = max(sub, (max_tile_bytes // row_bytes) // sub * sub)
        tile_n = int(min(budget_rows, n2d))
        if two_cores:
            # Keep >= 2 row blocks so the "parallel" row axis shards across
            # v7x's two TensorCores. Skipped on single-TC v5e/v6e where the
            # extra block is pure per-step overhead.
            half_rows = ((n2d + 1) // 2 + sub - 1) // sub * sub
            tile_n = int(min(tile_n, max(sub, half_rows)))

    grid = (pl.cdiv(n2d, tile_n), pl.cdiv(f2d, tile_f))
    blk = pl.BlockSpec((tile_n, tile_f), lambda i, j: (i, j))
    # TODO(synk): if an xprof trace shows exposed DMA at the 4 MiB block size
    # on v7x, try pipeline_mode=pl.Buffered(3) on the two input specs & sweep.

    # VMEM limit from the real footprint: 4 refs/step x 2 pipeline buffers,
    # plus headroom for compiler-internal scratch; capped below physical VMEM.
    block_bytes = tile_n * tile_f * 2 * (real_bytes + img_bytes)
    vmem_needed = 2 * block_bytes + (8 << 20)
    vmem_limit = int(max(32 << 20,
                         min(vmem_needed, max(vmem_cap - (16 << 20), 32 << 20))))

    # Advisory cost hint so XLA schedules surrounding ops around this
    # bandwidth-heavy call.
    bytes_accessed = 2 * total * (real_bytes + img_bytes)   # read + write both
    cost = pl.CostEstimate(flops=3 * total, transcendentals=0,
                           bytes_accessed=bytes_accessed)

    out_real, out_img = pl.pallas_call(
        _complex_relu_kernel,
        out_shape=(
            jax.ShapeDtypeStruct((n2d, f2d), real.dtype),
            jax.ShapeDtypeStruct((n2d, f2d), img.dtype),
        ),
        grid_spec=pltpu.PrefetchScalarGridSpec(
            num_scalar_prefetch=0,
            grid=grid,
            in_specs=[blk, blk],
            out_specs=[blk, blk],
        ),
        compiler_params=pltpu.CompilerParams(
            dimension_semantics=("parallel", "parallel"),
            vmem_limit_bytes=vmem_limit,
        ),
        cost_estimate=cost,
    )(real2d, img2d)
    return out_real.reshape(orig_shape), out_img.reshape(orig_shape)


if __name__ == "__main__":
    key = jax.random.PRNGKey(0)
    k_real, k_img = jax.random.split(key)

    # nodes x hidden, consistent with how the module is used (MagNet-style).
    N, F = 128, 256
    real = jax.random.normal(k_real, (N, F), dtype=jnp.float32)
    img = jax.random.normal(k_img, (N, F), dtype=jnp.float32)

    out_real, out_img = complex_relu(real, img)
    out_real2, out_img2 = complex_relu((real, img))        # pair-call form
    jax.block_until_ready((out_real, out_img, out_real2, out_img2))

    mask = (real >= 0).astype(jnp.float32)
    ref_real, ref_img = mask * real, mask * img
    assert out_real.dtype == real.dtype and out_img.dtype == img.dtype
    assert jnp.allclose(out_real, ref_real), "real part mismatch"
    assert jnp.allclose(out_img, ref_img), "imag part mismatch"
    assert jnp.allclose(out_real2, ref_real) and jnp.allclose(out_img2, ref_img)

    # F not a multiple of 128, but total % 128 == 0 -> lane-dense re-block.
    N2, F2 = 100, 96
    r2 = jax.random.normal(k_real, (N2, F2), dtype=jnp.float32)
    i2 = jax.random.normal(k_img, (N2, F2), dtype=jnp.float32)
    o_r, o_i = complex_relu(r2, i2)
    jax.block_until_ready((o_r, o_i))
    m2 = (r2 >= 0).astype(jnp.float32)
    assert o_r.shape == (N2, F2) and o_i.shape == (N2, F2)
    assert jnp.allclose(o_r, m2 * r2), "re-blocked real mismatch"
    assert jnp.allclose(o_i, m2 * i2), "re-blocked imag mismatch"

    # Fully ragged shape (masked-store fallback path).
    N3, F3 = 7, 33
    r3 = jax.random.normal(k_real, (N3, F3), dtype=jnp.float32)
    i3 = jax.random.normal(k_img, (N3, F3), dtype=jnp.float32)
    o_r3, o_i3 = complex_relu(r3, i3)

    # bf16 inputs (exercises 16-row sublane rounding).
    N4, F4 = 64, 128
    r4 = jax.random.normal(k_real, (N4, F4), dtype=jnp.bfloat16)
    i4 = jax.random.normal(k_img, (N4, F4), dtype=jnp.bfloat16)
    o_r4, o_i4 = complex_relu(r4, i4)
    jax.block_until_ready((o_r3, o_i3, o_r4, o_i4))

    m3 = (r3 >= 0).astype(jnp.float32)
    assert jnp.allclose(o_r3, m3 * r3) and jnp.allclose(o_i3, m3 * i3)
    m4 = (r4 >= 0).astype(jnp.bfloat16)
    assert o_r4.dtype == jnp.bfloat16 and o_i4.dtype == jnp.bfloat16
    assert jnp.allclose(o_r4.astype(jnp.float32), (m4 * r4).astype(jnp.float32))
    assert jnp.allclose(o_i4.astype(jnp.float32), (m4 * i4).astype(jnp.float32))

    print("KERNEL_OK")
</pallas_src>

<mosaic_0001>
module attributes {stable_mosaic.version = 11 : i64} {
  func.func @_complex_relu_kernel(%arg0: i32, %arg1: i32, %arg2: memref<128x256xf32, #tpu.memory_space<vmem>>, %arg3: memref<128x256xf32, #tpu.memory_space<vmem>>, %arg4: memref<128x256xf32, #tpu.memory_space<vmem>>, %arg5: memref<128x256xf32, #tpu.memory_space<vmem>>) attributes {dimension_semantics = [#tpu.dimension_semantics<parallel>, #tpu.dimension_semantics<parallel>], iteration_bounds = array<i64: 1, 1>, scalar_prefetch = 0 : i64, scratch_operands = 0 : i64, tpu.core_type = #tpu.core_type<tc>, window_params = [{transform_indices = @transform_0, window_bounds = array<i64: 128, 256>}, {transform_indices = @transform_1, window_bounds = array<i64: 128, 256>}, {transform_indices = @transform_2, window_bounds = array<i64: 128, 256>}, {transform_indices = @transform_3, window_bounds = array<i64: 128, 256>}]} {
    %c0 = arith.constant 0 : index
    %c0_0 = arith.constant 0 : index
    %0 = vector.load %arg2[%c0, %c0_0] : memref<128x256xf32, #tpu.memory_space<vmem>>, vector<128x256xf32>
    %c0_1 = arith.constant 0 : index
    %c0_2 = arith.constant 0 : index
    %1 = vector.load %arg3[%c0_1, %c0_2] : memref<128x256xf32, #tpu.memory_space<vmem>>, vector<128x256xf32>
    %cst = arith.constant 0.000000e+00 : f32
    %2 = vector.broadcast %cst : f32 to vector<128x256xf32>
    %3 = arith.cmpf oge, %0, %2 : vector<128x256xf32>
    %4 = arith.extui %3 : vector<128x256xi1> to vector<128x256xi32>
    %5 = arith.sitofp %4 : vector<128x256xi32> to vector<128x256xf32>
    %6 = arith.mulf %0, %5 : vector<128x256xf32>
    %c0_3 = arith.constant 0 : index
    %c0_4 = arith.constant 0 : index
    %7 = vector.load %arg4[%c0_3, %c0_4] : memref<128x256xf32, #tpu.memory_space<vmem>>, vector<128x256xf32>
    tpu.vector_store %arg4[%c0_3, %c0_4], %6 {strides = array<i32>} : memref<128x256xf32, #tpu.memory_space<vmem>>, vector<128x256xf32>,
    %8 = arith.extui %3 : vector<128x256xi1> to vector<128x256xi32>
    %9 = arith.sitofp %8 : vector<128x256xi32> to vector<128x256xf32>
    %10 = arith.mulf %1, %9 : vector<128x256xf32>
    %c0_5 = arith.constant 0 : index
    %c0_6 = arith.constant 0 : index
    %11 = vector.load %arg5[%c0_5, %c0_6] : memref<128x256xf32, #tpu.memory_space<vmem>>, vector<128x256xf32>
    tpu.vector_store %arg5[%c0_5, %c0_6], %10 {strides = array<i32>} : memref<128x256xf32, #tpu.memory_space<vmem>>, vector<128x256xf32>,
    return
  }
  func.func @transform_0(%arg0: i32, %arg1: i32) -> (i32, i32) {
    %c0_i32 = arith.constant 0 : i32
    return %arg0, %arg1 : i32, i32
  }
  func.func @transform_1(%arg0: i32, %arg1: i32) -> (i32, i32) {
    %c0_i32 = arith.constant 0 : i32
    return %arg0, %arg1 : i32, i32
  }
  func.func @transform_2(%arg0: i32, %arg1: i32) -> (i32, i32) {
    %c0_i32 = arith.constant 0 : i32
    return %arg0, %arg1 : i32, i32
  }
  func.func @transform_3(%arg0: i32, %arg1: i32) -> (i32, i32) {
    %c0_i32 = arith.constant 0 : i32
    return %arg0, %arg1 : i32, i32
  }
}

</mosaic_0001>

<llo_original>
// kernel: tpu_custom_call.1
$region0: #{tpu_custom_call.1}
  #allocation0 [shape = 'u32[]', space=smem, size = 0x4, offset = 0x4, fixed_abs, tag = 'smem constant byte address 0x4 - core index']
  #allocation1 [shape = 'u32[72,128]{1,0:T(1,128)}', space=vmem, size = 0x9000, scoped, tag = 'internal scratch']
  %s0 = inlined_call_operand.hbm [shape: f32[128,256], index: 0, kind: input, shape index: {}]
  %s1 = inlined_call_operand.hbm [shape: f32[128,256], index: 1, kind: input, shape index: {}]
  %s2 = inlined_call_operand.hbm [shape: f32[128,256], index: 2, kind: output, shape index: {0}]
  %s3 = inlined_call_operand.hbm [shape: f32[128,256], index: 3, kind: output, shape index: {1}]
  %4 = xla_tuple %s2, %s3
  %s5 = sld [smem:[#allocation0]]
  $region34: #{tpu_custom_call.1} parent=0
    _
  %s7 = ssub.s32 1, %s5
  %s8 = scalar_select 0, %s7, %s5
  $region1: #{tpu_custom_call.1} parent=0
    #allocation2 [shape = 'u8[131072]{0}', space=vmem, size = 0x20000, scoped, tag = 'input window, operand 0, single buffered']
    #allocation3 [shape = 's32[1]{0}', space=sflag, size = 0x4, scoped, tag = 'scoped memory for tpu_custom_call.1']
    #allocation4 [shape = 's32[1]{0}', space=sflag, size = 0x4, scoped, tag = 'scoped memory for tpu_custom_call.1']
    #allocation5 [shape = 'u8[131072]{0}', space=vmem, size = 0x20000, scoped, tag = 'input window, operand 1, single buffered']
    #allocation6 [shape = 's32[1]{0}', space=sflag, size = 0x4, scoped, tag = 'scoped memory for tpu_custom_call.1']
    #allocation7 [shape = 'u8[131072]{0}', space=vmem, size = 0x20000, scoped, tag = 'output window, operand 0, single buffered']
    #allocation8 [shape = 'u8[131072]{0}', space=vmem, size = 0x20000, scoped, tag = 'output window, operand 1, single buffered']
    #allocation9 [shape = 's32[1]{0}', space=sflag, size = 0x4, scoped, tag = 'scoped memory for tpu_custom_call.1']
    %9 = vsyncpa [#allocation3], 0
    %10 = vsyncpa [#allocation6], 0
    %11 = vsyncpa [#allocation4], 0
    %12 = vsyncpa [#allocation9], 0
    // Predicated region
    $region2: #{tpu_custom_call.1} parent=1 // pred_check
      _
    $region3: #{tpu_custom_call.1} parent=1 // pred_check_branch
      %14 = sbr.rel (0) target = $region5
    $region4: #{tpu_custom_call.1} parent=1 // pred_region
      %16 = vsyncadd [#allocation3], 0
      %s17 = sshll.u32 %s0, 4
      %s18 = int_to_ptr.hbm [resolvable:$true] %s17
      %s19 = sshll.u32 [#allocation2], 4
      %s20 = int_to_ptr.vmem [resolvable:$true] %s19
      %25 = dma.hbm_to_vmem [thread:$0]  %s18, 4096, %s20, [#allocation3], 256, 256, 16
    $region5: #{tpu_custom_call.1} parent=1 // pred_fallthru
      _
    // Predicated region
    $region6: #{tpu_custom_call.1} parent=1 // pred_check
      _
    $region7: #{tpu_custom_call.1} parent=1 // pred_check_branch
      %27 = sbr.rel (0) target = $region9
    $region8: #{tpu_custom_call.1} parent=1 // pred_region
      %29 = vsyncadd [#allocation6], 0
      %s30 = sshll.u32 %s1, 4
      %s31 = int_to_ptr.hbm [resolvable:$true] %s30
      %s32 = sshll.u32 [#allocation5], 4
      %s33 = int_to_ptr.vmem [resolvable:$true] %s32
      %38 = dma.hbm_to_vmem [thread:$0]  %s31, 4096, %s33, [#allocation6], 256, 256, 16
    $region9: #{tpu_custom_call.1} parent=1 // pred_fallthru
      _
    // Predicated region
    $region10: #{tpu_custom_call.1} parent=1 // pred_check
      _
    $region11: #{tpu_custom_call.1} parent=1 // pred_check_branch
      %40 = sbr.rel (0) target = $region13
    $region12: #{tpu_custom_call.1} parent=1 // pred_region
      %42 = dma.done [#allocation3], 4096
    $region13: #{tpu_custom_call.1} parent=1 // pred_fallthru
      _
    // Predicated region
    $region14: #{tpu_custom_call.1} parent=1 // pred_check
      _
    $region15: #{tpu_custom_call.1} parent=1 // pred_check_branch
      %44 = sbr.rel (0) target = $region17
    $region16: #{tpu_custom_call.1} parent=1 // pred_region
      %46 = dma.done [#allocation6], 4096
    $region17: #{tpu_custom_call.1} parent=1 // pred_fallthru
      _
    %v47 = vld [vmem:[#allocation2] sm:$0xff]
    %v48 = vld [vmem:[#allocation2 + $0x8] sm:$0xff]
    %v49 = vld [vmem:[#allocation2 + $0x10] sm:$0xff]
    %v50 = vld [vmem:[#allocation2 + $0x18] sm:$0xff]
    %v51 = vld [vmem:[#allocation2 + $0x20] sm:$0xff]
    %v52 = vld [vmem:[#allocation2 + $0x28] sm:$0xff]
    %v53 = vld [vmem:[#allocation2 + $0x30] sm:$0xff]
    %v54 = vld [vmem:[#allocation2 + $0x38] sm:$0xff]
    %v55 = vld [vmem:[#allocation2 + $0x40] sm:$0xff]
    %v56 = vld [vmem:[#allocation2 + $0x48] sm:$0xff]
    %v57 = vld [vmem:[#allocation2 + $0x50] sm:$0xff]
    %v58 = vld [vmem:[#allocation2 + $0x58] sm:$0xff]
    %v59 = vld [vmem:[#allocation2 + $0x60] sm:$0xff]
    %v60 = vld [vmem:[#allocation2 + $0x68] sm:$0xff]
    %v61 = vld [vmem:[#allocation2 + $0x70] sm:$0xff]
    %v62 = vld [vmem:[#allocation2 + $0x78] sm:$0xff]
    %v63 = vld [vmem:[#allocation2 + $0x80] sm:$0xff]
    %v64 = vld [vmem:[#allocation2 + $0x88] sm:$0xff]
    %v65 = vld [vmem:[#allocation2 + $0x90] sm:$0xff]
    %v66 = vld [vmem:[#allocation2 + $0x98] sm:$0xff]
    %v67 = vld [vmem:[#allocation2 + $0xa0] sm:$0xff]
    %v68 = vld [vmem:[#allocation2 + $0xa8] sm:$0xff]
    %v69 = vld [vmem:[#allocation2 + $0xb0] sm:$0xff]
    %v70 = vld [vmem:[#allocation2 + $0xb8] sm:$0xff]
    %v71 = vld [vmem:[#allocation2 + $0xc0] sm:$0xff]
    %v72 = vld [vmem:[#allocation2 + $0xc8] sm:$0xff]
    %v73 = vld [vmem:[#allocation2 + $0xd0] sm:$0xff]
    %v74 = vld [vmem:[#allocation2 + $0xd8] sm:$0xff]
    %v75 = vld [vmem:[#allocation2 + $0xe0] sm:$0xff]
    %v76 = vld [vmem:[#allocation2 + $0xe8] sm:$0xff]
    %v77 = vld [vmem:[#allocation2 + $0xf0] sm:$0xff]
    %v78 = vld [vmem:[#allocation2 + $0xf8] sm:$0xff]
    %v79 = vld [vmem:[#allocation5] sm:$0xff]
    %v80 = vld [vmem:[#allocation5 + $0x8] sm:$0xff]
    %v81 = vld [vmem:[#allocation5 + $0x10] sm:$0xff]
    %v82 = vld [vmem:[#allocation5 + $0x18] sm:$0xff]
    %v83 = vld [vmem:[#allocation5 + $0x20] sm:$0xff]
    %v84 = vld [vmem:[#allocation5 + $0x28] sm:$0xff]
    %v85 = vld [vmem:[#allocation5 + $0x30] sm:$0xff]
    %v86 = vld [vmem:[#allocation5 + $0x38] sm:$0xff]
    %v87 = vld [vmem:[#allocation5 + $0x40] sm:$0xff]
    %v88 = vld [vmem:[#allocation5 + $0x48] sm:$0xff]
    %v89 = vld [vmem:[#allocation5 + $0x50] sm:$0xff]
    %v90 = vld [vmem:[#allocation5 + $0x58] sm:$0xff]
    %v91 = vld [vmem:[#allocation5 + $0x60] sm:$0xff]
    %v92 = vld [vmem:[#allocation5 + $0x68] sm:$0xff]
    %v93 = vld [vmem:[#allocation5 + $0x70] sm:$0xff]
    %v94 = vld [vmem:[#allocation5 + $0x78] sm:$0xff]
    %v95 = vld [vmem:[#allocation5 + $0x80] sm:$0xff]
    %v96 = vld [vmem:[#allocation5 + $0x88] sm:$0xff]
    %v97 = vld [vmem:[#allocation5 + $0x90] sm:$0xff]
    %v98 = vld [vmem:[#allocation5 + $0x98] sm:$0xff]
    %v99 = vld [vmem:[#allocation5 + $0xa0] sm:$0xff]
    %v100 = vld [vmem:[#allocation5 + $0xa8] sm:$0xff]
    %v101 = vld [vmem:[#allocation5 + $0xb0] sm:$0xff]
    %v102 = vld [vmem:[#allocation5 + $0xb8] sm:$0xff]
    %v103 = vld [vmem:[#allocation5 + $0xc0] sm:$0xff]
    %v104 = vld [vmem:[#allocation5 + $0xc8] sm:$0xff]
    %v105 = vld [vmem:[#allocation5 + $0xd0] sm:$0xff]
    %v106 = vld [vmem:[#allocation5 + $0xd8] sm:$0xff]
    %v107 = vld [vmem:[#allocation5 + $0xe0] sm:$0xff]
    %v108 = vld [vmem:[#allocation5 + $0xe8] sm:$0xff]
    %v109 = vld [vmem:[#allocation5 + $0xf0] sm:$0xff]
    %v110 = vld [vmem:[#allocation5 + $0xf8] sm:$0xff]
    %vm111 = vcmp.ge.f32.partialorder %v47, 0.0
    %vm112 = vcmp.ge.f32.partialorder %v48, 0.0
    %vm113 = vcmp.ge.f32.partialorder %v49, 0.0
    %vm114 = vcmp.ge.f32.partialorder %v50, 0.0
    %vm115 = vcmp.ge.f32.partialorder %v51, 0.0
    %vm116 = vcmp.ge.f32.partialorder %v52, 0.0
    %vm117 = vcmp.ge.f32.partialorder %v53, 0.0
    %vm118 = vcmp.ge.f32.partialorder %v54, 0.0
    %vm119 = vcmp.ge.f32.partialorder %v55, 0.0
    %vm120 = vcmp.ge.f32.partialorder %v56, 0.0
    %vm121 = vcmp.ge.f32.partialorder %v57, 0.0
    %vm122 = vcmp.ge.f32.partialorder %v58, 0.0
    %vm123 = vcmp.ge.f32.partialorder %v59, 0.0
    %vm124 = vcmp.ge.f32.partialorder %v60, 0.0
    %vm125 = vcmp.ge.f32.partialorder %v61, 0.0
    %vm126 = vcmp.ge.f32.partialorder %v62, 0.0
    %vm127 = vcmp.ge.f32.partialorder %v63, 0.0
    %vm128 = vcmp.ge.f32.partialorder %v64, 0.0
    %vm129 = vcmp.ge.f32.partialorder %v65, 0.0
    %vm130 = vcmp.ge.f32.partialorder %v66, 0.0
    %vm131 = vcmp.ge.f32.partialorder %v67, 0.0
    %vm132 = vcmp.ge.f32.partialorder %v68, 0.0
    %vm133 = vcmp.ge.f32.partialorder %v69, 0.0
    %vm134 = vcmp.ge.f32.partialorder %v70, 0.0
    %vm135 = vcmp.ge.f32.partialorder %v71, 0.0
    %vm136 = vcmp.ge.f32.partialorder %v72, 0.0
    %vm137 = vcmp.ge.f32.partialorder %v73, 0.0
    %vm138 = vcmp.ge.f32.partialorder %v74, 0.0
    %vm139 = vcmp.ge.f32.partialorder %v75, 0.0
    %vm140 = vcmp.ge.f32.partialorder %v76, 0.0
    %vm141 = vcmp.ge.f32.partialorder %v77, 0.0
    %vm142 = vcmp.ge.f32.partialorder %v78, 0.0
    %v143 = vsel %vm111, 1, 0
    %v144 = vsel %vm112, 1, 0
    %v145 = vsel %vm113, 1, 0
    %v146 = vsel %vm114, 1, 0
    %v147 = vsel %vm115, 1, 0
    %v148 = vsel %vm116, 1, 0
    %v149 = vsel %vm117, 1, 0
    %v150 = vsel %vm118, 1, 0
    %v151 = vsel %vm119, 1, 0
    %v152 = vsel %vm120, 1, 0
    %v153 = vsel %vm121, 1, 0
    %v154 = vsel %vm122, 1, 0
    %v155 = vsel %vm123, 1, 0
    %v156 = vsel %vm124, 1, 0
    %v157 = vsel %vm125, 1, 0
    %v158 = vsel %vm126, 1, 0
    %v159 = vsel %vm127, 1, 0
    %v160 = vsel %vm128, 1, 0
    %v161 = vsel %vm129, 1, 0
    %v162 = vsel %vm130, 1, 0
    %v163 = vsel %vm131, 1, 0
    %v164 = vsel %vm132, 1, 0
    %v165 = vsel %vm133, 1, 0
    %v166 = vsel %vm134, 1, 0
    %v167 = vsel %vm135, 1, 0
    %v168 = vsel %vm136, 1, 0
    %v169 = vsel %vm137, 1, 0
    %v170 = vsel %vm138, 1, 0
    %v171 = vsel %vm139, 1, 0
    %v172 = vsel %vm140, 1, 0
    %v173 = vsel %vm141, 1, 0
    %v174 = vsel %vm142, 1, 0
    %v175 = vcvt.s32.f32 %v143
    %v176 = vcvt.s32.f32 %v144
    %v177 = vcvt.s32.f32 %v145
    %v178 = vcvt.s32.f32 %v146
    %v179 = vcvt.s32.f32 %v147
    %v180 = vcvt.s32.f32 %v148
    %v181 = vcvt.s32.f32 %v149
    %v182 = vcvt.s32.f32 %v150
    %v183 = vcvt.s32.f32 %v151
    %v184 = vcvt.s32.f32 %v152
    %v185 = vcvt.s32.f32 %v153
    %v186 = vcvt.s32.f32 %v154
    %v187 = vcvt.s32.f32 %v155
    %v188 = vcvt.s32.f32 %v156
    %v189 = vcvt.s32.f32 %v157
    %v190 = vcvt.s32.f32 %v158
    %v191 = vcvt.s32.f32 %v159
    %v192 = vcvt.s32.f32 %v160
    %v193 = vcvt.s32.f32 %v161
    %v194 = vcvt.s32.f32 %v162
    %v195 = vcvt.s32.f32 %v163
    %v196 = vcvt.s32.f32 %v164
    %v197 = vcvt.s32.f32 %v165
    %v198 = vcvt.s32.f32 %v166
    %v199 = vcvt.s32.f32 %v167
    %v200 = vcvt.s32.f32 %v168
    %v201 = vcvt.s32.f32 %v169
    %v202 = vcvt.s32.f32 %v170
    %v203 = vcvt.s32.f32 %v171
    %v204 = vcvt.s32.f32 %v172
    %v205 = vcvt.s32.f32 %v173
    %v206 = vcvt.s32.f32 %v174
    %v207 = vmul.f32 %v47, %v175
    %v208 = vmul.f32 %v48, %v176
    %v209 = vmul.f32 %v49, %v177
    %v210 = vmul.f32 %v50, %v178
    %v211 = vmul.f32 %v51, %v179
    %v212 = vmul.f32 %v52, %v180
    %v213 = vmul.f32 %v53, %v181
    %v214 = vmul.f32 %v54, %v182
    %v215 = vmul.f32 %v55, %v183
    %v216 = vmul.f32 %v56, %v184
    %v217 = vmul.f32 %v57, %v185
    %v218 = vmul.f32 %v58, %v186
    %v219 = vmul.f32 %v59, %v187
    %v220 = vmul.f32 %v60, %v188
    %v221 = vmul.f32 %v61, %v189
    %v222 = vmul.f32 %v62, %v190
    %v223 = vmul.f32 %v63, %v191
    %v224 = vmul.f32 %v64, %v192
    %v225 = vmul.f32 %v65, %v193
    %v226 = vmul.f32 %v66, %v194
    %v227 = vmul.f32 %v67, %v195
    %v228 = vmul.f32 %v68, %v196
    %v229 = vmul.f32 %v69, %v197
    %v230 = vmul.f32 %v70, %v198
    %v231 = vmul.f32 %v71, %v199
    %v232 = vmul.f32 %v72, %v200
    %v233 = vmul.f32 %v73, %v201
    %v234 = vmul.f32 %v74, %v202
    %v235 = vmul.f32 %v75, %v203
    %v236 = vmul.f32 %v76, %v204
    %v237 = vmul.f32 %v77, %v205
    %v238 = vmul.f32 %v78, %v206
    %239 = vst [vmem:[#allocation7] sm:$0xff] %v207
    %240 = vst [vmem:[#allocation7 + $0x8] sm:$0xff] %v208
    %241 = vst [vmem:[#allocation7 + $0x10] sm:$0xff] %v209
    %242 = vst [vmem:[#allocation7 + $0x18] sm:$0xff] %v210
    %243 = vst [vmem:[#allocation7 + $0x20] sm:$0xff] %v211
    %244 = vst [vmem:[#allocation7 + $0x28] sm:$0xff] %v212
    %245 = vst [vmem:[#allocation7 + $0x30] sm:$0xff] %v213
    %246 = vst [vmem:[#allocation7 + $0x38] sm:$0xff] %v214
    %247 = vst [vmem:[#allocation7 + $0x40] sm:$0xff] %v215
    %248 = vst [vmem:[#allocation7 + $0x48] sm:$0xff] %v216
    %249 = vst [vmem:[#allocation7 + $0x50] sm:$0xff] %v217
    %250 = vst [vmem:[#allocation7 + $0x58] sm:$0xff] %v218
    %251 = vst [vmem:[#allocation7 + $0x60] sm:$0xff] %v219
    %252 = vst [vmem:[#allocation7 + $0x68] sm:$0xff] %v220
    %253 = vst [vmem:[#allocation7 + $0x70] sm:$0xff] %v221
    %254 = vst [vmem:[#allocation7 + $0x78] sm:$0xff] %v222
    %255 = vst [vmem:[#allocation7 + $0x80] sm:$0xff] %v223
    %256 = vst [vmem:[#allocation7 + $0x88] sm:$0xff] %v224
    %257 = vst [vmem:[#allocation7 + $0x90] sm:$0xff] %v225
    %258 = vst [vmem:[#allocation7 + $0x98] sm:$0xff] %v226
    %259 = vst [vmem:[#allocation7 + $0xa0] sm:$0xff] %v227
    %260 = vst [vmem:[#allocation7 + $0xa8] sm:$0xff] %v228
    %261 = vst [vmem:[#allocation7 + $0xb0] sm:$0xff] %v229
    %262 = vst [vmem:[#allocation7 + $0xb8] sm:$0xff] %v230
    %263 = vst [vmem:[#allocation7 + $0xc0] sm:$0xff] %v231
    %264 = vst [vmem:[#allocation7 + $0xc8] sm:$0xff] %v232
    %265 = vst [vmem:[#allocation7 + $0xd0] sm:$0xff] %v233
    %266 = vst [vmem:[#allocation7 + $0xd8] sm:$0xff] %v234
    %267 = vst [vmem:[#allocation7 + $0xe0] sm:$0xff] %v235
    %268 = vst [vmem:[#allocation7 + $0xe8] sm:$0xff] %v236
    %269 = vst [vmem:[#allocation7 + $0xf0] sm:$0xff] %v237
    %270 = vst [vmem:[#allocation7 + $0xf8] sm:$0xff] %v238
    %v271 = vmul.f32 %v79, %v175
    %v272 = vmul.f32 %v80, %v176
    %v273 = vmul.f32 %v81, %v177
    %v274 = vmul.f32 %v82, %v178
    %v275 = vmul.f32 %v83, %v179
    %v276 = vmul.f32 %v84, %v180
    %v277 = vmul.f32 %v85, %v181
    %v278 = vmul.f32 %v86, %v182
    %v279 = vmul.f32 %v87, %v183
    %v280 = vmul.f32 %v88, %v184
    %v281 = vmul.f32 %v89, %v185
    %v282 = vmul.f32 %v90, %v186
    %v283 = vmul.f32 %v91, %v187
    %v284 = vmul.f32 %v92, %v188
    %v285 = vmul.f32 %v93, %v189
    %v286 = vmul.f32 %v94, %v190
    %v287 = vmul.f32 %v95, %v191
    %v288 = vmul.f32 %v96, %v192
    %v289 = vmul.f32 %v97, %v193
    %v290 = vmul.f32 %v98, %v194
    %v291 = vmul.f32 %v99, %v195
    %v292 = vmul.f32 %v100, %v196
    %v293 = vmul.f32 %v101, %v197
    %v294 = vmul.f32 %v102, %v198
    %v295 = vmul.f32 %v103, %v199
    %v296 = vmul.f32 %v104, %v200
    %v297 = vmul.f32 %v105, %v201
    %v298 = vmul.f32 %v106, %v202
    %v299 = vmul.f32 %v107, %v203
    %v300 = vmul.f32 %v108, %v204
    %v301 = vmul.f32 %v109, %v205
    %v302 = vmul.f32 %v110, %v206
    %303 = vst [vmem:[#allocation8] sm:$0xff] %v271
    %304 = vst [vmem:[#allocation8 + $0x8] sm:$0xff] %v272
    %305 = vst [vmem:[#allocation8 + $0x10] sm:$0xff] %v273
    %306 = vst [vmem:[#allocation8 + $0x18] sm:$0xff] %v274
    %307 = vst [vmem:[#allocation8 + $0x20] sm:$0xff] %v275
    %308 = vst [vmem:[#allocation8 + $0x28] sm:$0xff] %v276
    %309 = vst [vmem:[#allocation8 + $0x30] sm:$0xff] %v277
    %310 = vst [vmem:[#allocation8 + $0x38] sm:$0xff] %v278
    %311 = vst [vmem:[#allocation8 + $0x40] sm:$0xff] %v279
    %312 = vst [vmem:[#allocation8 + $0x48] sm:$0xff] %v280
    %313 = vst [vmem:[#allocation8 + $0x50] sm:$0xff] %v281
    %314 = vst [vmem:[#allocation8 + $0x58] sm:$0xff] %v282
    %315 = vst [vmem:[#allocation8 + $0x60] sm:$0xff] %v283
    %316 = vst [vmem:[#allocation8 + $0x68] sm:$0xff] %v284
    %317 = vst [vmem:[#allocation8 + $0x70] sm:$0xff] %v285
    %318 = vst [vmem:[#allocation8 + $0x78] sm:$0xff] %v286
    %319 = vst [vmem:[#allocation8 + $0x80] sm:$0xff] %v287
    %320 = vst [vmem:[#allocation8 + $0x88] sm:$0xff] %v288
    %321 = vst [vmem:[#allocation8 + $0x90] sm:$0xff] %v289
    %322 = vst [vmem:[#allocation8 + $0x98] sm:$0xff] %v290
    %323 = vst [vmem:[#allocation8 + $0xa0] sm:$0xff] %v291
    %324 = vst [vmem:[#allocation8 + $0xa8] sm:$0xff] %v292
    %325 = vst [vmem:[#allocation8 + $0xb0] sm:$0xff] %v293
    %326 = vst [vmem:[#allocation8 + $0xb8] sm:$0xff] %v294
    %327 = vst [vmem:[#allocation8 + $0xc0] sm:$0xff] %v295
    %328 = vst [vmem:[#allocation8 + $0xc8] sm:$0xff] %v296
    %329 = vst [vmem:[#allocation8 + $0xd0] sm:$0xff] %v297
    %330 = vst [vmem:[#allocation8 + $0xd8] sm:$0xff] %v298
    %331 = vst [vmem:[#allocation8 + $0xe0] sm:$0xff] %v299
    %332 = vst [vmem:[#allocation8 + $0xe8] sm:$0xff] %v300
    %333 = vst [vmem:[#allocation8 + $0xf0] sm:$0xff] %v301
    %334 = vst [vmem:[#allocation8 + $0xf8] sm:$0xff] %v302
    // Predicated region
    $region18: #{tpu_custom_call.1} parent=1 // pred_check
      _
    $region19: #{tpu_custom_call.1} parent=1 // pred_check_branch
      %336 = sbr.rel (0) target = $region21
    $region20: #{tpu_custom_call.1} parent=1 // pred_region
      %338 = vsyncadd [#allocation4], 0
      %s339 = sshll.u32 [#allocation7], 4
      %s340 = int_to_ptr.vmem [resolvable:$true] %s339
      %s341 = sshll.u32 %s2, 4
      %s342 = int_to_ptr.hbm [resolvable:$true] %s341
      %347 = dma.vmem_to_hbm [thread:$0]  %s340, 4096, %s342, [#allocation4], 256, 256, 16
    $region21: #{tpu_custom_call.1} parent=1 // pred_fallthru
      _
    // Predicated region
    $region22: #{tpu_custom_call.1} parent=1 // pred_check
      _
    $region23: #{tpu_custom_call.1} parent=1 // pred_check_branch
      %349 = sbr.rel (0) target = $region25
    $region24: #{tpu_custom_call.1} parent=1 // pred_region
      %351 = vsyncadd [#allocation9], 0
      %s352 = sshll.u32 [#allocation8], 4
      %s353 = int_to_ptr.vmem [resolvable:$true] %s352
      %s354 = sshll.u32 %s3, 4
      %s355 = int_to_ptr.hbm [resolvable:$true] %s354
      %360 = dma.vmem_to_hbm [thread:$0]  %s353, 4096, %s355, [#allocation9], 256, 256, 16
    $region25: #{tpu_custom_call.1} parent=1 // pred_fallthru
      _
    // Predicated region
    $region26: #{tpu_custom_call.1} parent=1 // pred_check
      _
    $region27: #{tpu_custom_call.1} parent=1 // pred_check_branch
      %362 = sbr.rel (0) target = $region29
    $region28: #{tpu_custom_call.1} parent=1 // pred_region
      %364 = dma.done [#allocation4], 4096
    $region29: #{tpu_custom_call.1} parent=1 // pred_fallthru
      _
    // Predicated region
    $region30: #{tpu_custom_call.1} parent=1 // pred_check
      _
    $region31: #{tpu_custom_call.1} parent=1 // pred_check_branch
      %366 = sbr.rel (0) target = $region33
    $region32: #{tpu_custom_call.1} parent=1 // pred_region
      %368 = dma.done [#allocation9], 4096
    $region33: #{tpu_custom_call.1} parent=1 // pred_fallthru
      _
    %369 = vsyncpa [#allocation3], 1
    %370 = vsyncpa [#allocation6], 1
    %371 = vsyncpa [#allocation4], 1
    %372 = vsyncpa [#allocation9], 1

</llo_original>
